<compile_context>
chip_gen: v6e
topology: v6e:2x2x1
jax: 0.10.0
libtpu: 0.0.40
codegen_flags: <defaults>
</compile_context>

<pallas_src>
import functools

import jax
import jax.numpy as jnp
import numpy as np
from jax import lax
from jax.experimental import pallas as pl
from jax.experimental.pallas import tpu as pltpu


def _choose_row_block(H, W, target_lanes=2048):
    """Rows-per-block Hb: H % Hb == 0 and (Hb*W) % 128 == 0 (or Hb == H, which is always
    a legal full-dim block). Prefer >= 2 blocks per image and <= target_lanes lanes."""
    candidates = [hb for hb in range(1, H + 1)
                  if H % hb == 0 and (hb == H or (hb * W) % 128 == 0)]
    multi = [hb for hb in candidates if H // hb >= 2]
    pool = multi if multi else candidates
    within = [hb for hb in pool if hb * W <= target_lanes]
    return max(within) if within else min(pool)


def _conv3x3_kernel(xp_ref, xm_ref, xn_ref, w_ref, mask_ref, o_ref, *, Cin, Hb, W):
    # xp_ref/xm_ref/xn_ref: (1, Cin, Hb*W)  previous / current / next row-block (flat spatial)
    # w_ref:   (Cout, 9*Cin)   im2col-ordered weights
    # mask_ref:(2, Hb*W)       row 0: left-border keep-mask, row 1: right-border keep-mask
    # o_ref:   (1, Cout, Hb*W)
    i = pl.program_id(1)
    nb = pl.num_programs(1)
    HbW = Hb * W

    mid = xm_ref[0]                        # (Cin, Hb*W)   image rows [i*Hb, i*Hb+Hb)
    top = xp_ref[0][:, (Hb - 1) * W:]      # (Cin, W)      image row  i*Hb - 1
    bot = xn_ref[0][:, :W]                 # (Cin, W)      image row  i*Hb + Hb

    # Zero the halo rows at the top / bottom image border.
    top = top * jnp.where(i == 0, 0.0, 1.0)
    bot = bot * jnp.where(i == nb - 1, 0.0, 1.0)

    # Flattened padded tile: [0 | halo-top row | Hb mid rows | halo-bottom row | 0]
    zcol = jnp.zeros((Cin, 1), dtype=mid.dtype)
    x_ext = jnp.concatenate([zcol, top, mid, bot, zcol], axis=1)   # (Cin, (Hb+2)*W + 2)

    # Keep-masks that zero the wrapped-around taps at the left / right image border.
    left_ok = mask_ref[0:1, :]             # (1, Hb*W)
    right_ok = mask_ref[1:2, :]            # (1, Hb*W)

    # im2col in the flat domain: tap (ky, kx) of flat output position j reads
    # x_ext[:, j + ky*W + kx]  (static lane-shifted slices only, no reshapes).
    taps = []
    for ky in range(3):
        for kx in range(3):
            off = ky * W + kx
            t = x_ext[:, off:off + HbW]    # (Cin, Hb*W)
            if kx == 0:
                t = t * left_ok
            elif kx == 2:
                t = t * right_ok
            taps.append(t)
    x_taps = jnp.concatenate(taps, axis=0)                          # (9*Cin, Hb*W)

    # Single fused MXU matmul: K = 9*Cin, N = Hb*W (lane-dense), f32 accumulation.
    acc = jnp.dot(w_ref[...], x_taps, preferred_element_type=jnp.float32)
    o_ref[0, :, :] = acc.astype(o_ref.dtype)


def overlap_patch_embed(x, weight, bias=None):
    """OverlapPatchEmbed.forward: 3x3 same-conv, stride 1.

    x:      (B, Cin, H, W)  float32
    weight: (Cout, Cin, 3, 3)  (PyTorch OIHW layout)
    returns (B, Cout, H, W)
    """
    B, Cin, H, W = x.shape
    Cout = weight.shape[0]
    Hb = _choose_row_block(H, W)
    n_hb = H // Hb
    HbW = Hb * W

    # Free row-major reshapes (no data movement): spatial goes on the lane axis.
    x_flat = x.reshape(B, Cin, H * W)
    # (Cout, Cin, ky, kx) -> (Cout, ky, kx, Cin) -> (Cout, 9*Cin): matches tap ordering.
    w_mat = jnp.transpose(weight, (0, 2, 3, 1)).reshape(Cout, 9 * Cin)

    # Static W-border keep-masks (built on host once; tiny, VMEM-resident).
    w_pos = np.arange(HbW, dtype=np.int64) % W
    border_masks = jnp.asarray(
        np.stack([(w_pos != 0), (w_pos != W - 1)]).astype(np.float32))   # (2, Hb*W)

    kernel = functools.partial(_conv3x3_kernel, Cin=Cin, Hb=Hb, W=W)

    out_flat = pl.pallas_call(
        kernel,
        out_shape=jax.ShapeDtypeStruct((B, Cout, H * W), x.dtype),
        grid_spec=pltpu.PrefetchScalarGridSpec(
            num_scalar_prefetch=0,
            grid=(B, n_hb),
            in_specs=[
                # previous / current / next row-block (halo rows; index clamped at the
                # image borders, the stale halo row is zeroed inside the kernel)
                pl.BlockSpec((1, Cin, HbW),
                             lambda b, i: (b, 0, jnp.maximum(i - 1, 0))),
                pl.BlockSpec((1, Cin, HbW), lambda b, i: (b, 0, i)),
                pl.BlockSpec((1, Cin, HbW),
                             lambda b, i: (b, 0, jnp.minimum(i + 1, n_hb - 1))),
                # weights + masks: constant index_map -> loaded once, stays in VMEM
                pl.BlockSpec((Cout, 9 * Cin), lambda b, i: (0, 0)),
                pl.BlockSpec((2, HbW), lambda b, i: (0, 0)),
            ],
            out_specs=pl.BlockSpec((1, Cout, HbW), lambda b, i: (b, 0, i)),
        ),
        compiler_params=pltpu.CompilerParams(
            dimension_semantics=("parallel", "parallel"),
        ),
    )(x_flat, x_flat, x_flat, w_mat, border_masks)

    out = out_flat.reshape(B, Cout, H, W)
    if bias is not None:
        # TODO(synk): fold the bias add into the kernel epilogue if bias=True is ever
        # used (the module default is bias=False).
        out = out + bias.reshape(1, Cout, 1, 1)
    return out


def overlap_patch_embed_ref(x, weight, bias=None):
    """Pure-JAX reference (lax conv) for correctness checking."""
    out = lax.conv_general_dilated(
        x, weight,
        window_strides=(1, 1), padding=((1, 1), (1, 1)),
        dimension_numbers=("NCHW", "OIHW", "NCHW"),
    )
    if bias is not None:
        out = out + bias.reshape(1, -1, 1, 1)
    return out


if __name__ == "__main__":
    key = jax.random.PRNGKey(0)
    k_x, k_w = jax.random.split(key)

    B, in_c, H, W = 2, 3, 16, 16
    embed_dim = 48

    x = jax.random.normal(k_x, (B, in_c, H, W), dtype=jnp.float32)
    # Conv2d(in_c, embed_dim, 3, bias=False) -> weight (embed_dim, in_c, 3, 3)
    weight = jax.random.normal(
        k_w, (embed_dim, in_c, 3, 3), dtype=jnp.float32
    ) * 0.1

    out = jax.block_until_ready(overlap_patch_embed(x, weight))
    ref = jax.block_until_ready(overlap_patch_embed_ref(x, weight))

    assert out.shape == (B, embed_dim, H, W), out.shape
    np.testing.assert_allclose(np.asarray(out), np.asarray(ref),
                               rtol=1e-4, atol=1e-4)
    print("KERNEL_OK")
</pallas_src>

<mosaic_0001>
module attributes {stable_mosaic.version = 11 : i64} {
  func.func @_conv3x3_kernel(%arg0: i32, %arg1: i32, %arg2: memref<1x3x128xf32, #tpu.memory_space<vmem>>, %arg3: memref<1x3x128xf32, #tpu.memory_space<vmem>>, %arg4: memref<1x3x128xf32, #tpu.memory_space<vmem>>, %arg5: memref<48x27xf32, #tpu.memory_space<vmem>>, %arg6: memref<2x128xf32, #tpu.memory_space<vmem>>, %arg7: memref<1x48x128xf32, #tpu.memory_space<vmem>>) attributes {dimension_semantics = [#tpu.dimension_semantics<parallel>, #tpu.dimension_semantics<parallel>], iteration_bounds = array<i64: 2, 2>, scalar_prefetch = 0 : i64, scratch_operands = 0 : i64, tpu.core_type = #tpu.core_type<tc>, window_params = [{transform_indices = @transform_0, window_bounds = array<i64: 1, 3, 128>}, {transform_indices = @transform_1, window_bounds = array<i64: 1, 3, 128>}, {transform_indices = @transform_2, window_bounds = array<i64: 1, 3, 128>}, {pipeline_mode = #tpu.pipeline_mode<synchronous>, transform_indices = @transform_3, window_bounds = array<i64: 48, 27>}, {pipeline_mode = #tpu.pipeline_mode<synchronous>, transform_indices = @transform_4, window_bounds = array<i64: 2, 128>}, {transform_indices = @transform_5, window_bounds = array<i64: 1, 48, 128>}]} {
    %c0 = arith.constant 0 : index
    %c0_0 = arith.constant 0 : index
    %c0_1 = arith.constant 0 : index
    %0 = vector.load %arg3[%c0, %c0_0, %c0_1] : memref<1x3x128xf32, #tpu.memory_space<vmem>>, vector<1x3x128xf32>
    %1 = vector.shape_cast %0 : vector<1x3x128xf32> to vector<3x128xf32>
    %c0_2 = arith.constant 0 : index
    %c0_3 = arith.constant 0 : index
    %c0_4 = arith.constant 0 : index
    %2 = vector.load %arg2[%c0_2, %c0_3, %c0_4] : memref<1x3x128xf32, #tpu.memory_space<vmem>>, vector<1x3x128xf32>
    %3 = vector.shape_cast %2 : vector<1x3x128xf32> to vector<3x128xf32>
    %4 = vector.extract_strided_slice %3 {offsets = [0, 112], sizes = [3, 16], strides = [1, 1]} : vector<3x128xf32> to vector<3x16xf32>
    %c0_5 = arith.constant 0 : index
    %c0_6 = arith.constant 0 : index
    %c0_7 = arith.constant 0 : index
    %5 = vector.load %arg4[%c0_5, %c0_6, %c0_7] : memref<1x3x128xf32, #tpu.memory_space<vmem>>, vector<1x3x128xf32>
    %6 = vector.shape_cast %5 : vector<1x3x128xf32> to vector<3x128xf32>
    %7 = vector.extract_strided_slice %6 {offsets = [0, 0], sizes = [3, 16], strides = [1, 1]} : vector<3x128xf32> to vector<3x16xf32>
    %c0_i32 = arith.constant 0 : i32
    %8 = arith.cmpi eq, %arg1, %c0_i32 : i32
    %cst = arith.constant 0.000000e+00 : f32
    %cst_8 = arith.constant 1.000000e+00 : f32
    %9 = arith.select %8, %cst, %cst_8 : f32
    %10 = vector.broadcast %9 : f32 to vector<3x16xf32>
    %11 = arith.mulf %4, %10 : vector<3x16xf32>
    %c1_i32 = arith.constant 1 : i32
    %12 = arith.cmpi eq, %arg1, %c1_i32 : i32
    %cst_9 = arith.constant 0.000000e+00 : f32
    %cst_10 = arith.constant 1.000000e+00 : f32
    %13 = arith.select %12, %cst_9, %cst_10 : f32
    %14 = vector.broadcast %13 : f32 to vector<3x16xf32>
    %15 = arith.mulf %7, %14 : vector<3x16xf32>
    %cst_11 = arith.constant 0.000000e+00 : f32
    %16 = vector.broadcast %cst_11 : f32 to vector<3x1xf32>
    %17 = tpu.concatenate %16, %11, %1, %15, %16 in 1 : vector<3x1xf32>, vector<3x16xf32>, vector<3x128xf32>, vector<3x16xf32>, vector<3x1xf32> -> vector<3x162xf32>
    %c0_12 = arith.constant 0 : index
    %c0_13 = arith.constant 0 : index
    %18 = vector.load %arg6[%c0_12, %c0_13] : memref<2x128xf32, #tpu.memory_space<vmem>>, vector<1x128xf32>
    %c1 = arith.constant 1 : index
    %c0_14 = arith.constant 0 : index
    %19 = vector.load %arg6[%c1, %c0_14] : memref<2x128xf32, #tpu.memory_space<vmem>>, vector<1x128xf32>
    %20 = vector.extract_strided_slice %17 {offsets = [0, 0], sizes = [3, 128], strides = [1, 1]} : vector<3x162xf32> to vector<3x128xf32>
    %21 = vector.broadcast %18 : vector<1x128xf32> to vector<3x128xf32>
    %22 = arith.mulf %20, %21 : vector<3x128xf32>
    %23 = vector.extract_strided_slice %17 {offsets = [0, 1], sizes = [3, 128], strides = [1, 1]} : vector<3x162xf32> to vector<3x128xf32>
    %24 = vector.extract_strided_slice %17 {offsets = [0, 2], sizes = [3, 128], strides = [1, 1]} : vector<3x162xf32> to vector<3x128xf32>
    %25 = vector.broadcast %19 : vector<1x128xf32> to vector<3x128xf32>
    %26 = arith.mulf %24, %25 : vector<3x128xf32>
    %27 = vector.extract_strided_slice %17 {offsets = [0, 16], sizes = [3, 128], strides = [1, 1]} : vector<3x162xf32> to vector<3x128xf32>
    %28 = vector.broadcast %18 : vector<1x128xf32> to vector<3x128xf32>
    %29 = arith.mulf %27, %28 : vector<3x128xf32>
    %30 = vector.extract_strided_slice %17 {offsets = [0, 17], sizes = [3, 128], strides = [1, 1]} : vector<3x162xf32> to vector<3x128xf32>
    %31 = vector.extract_strided_slice %17 {offsets = [0, 18], sizes = [3, 128], strides = [1, 1]} : vector<3x162xf32> to vector<3x128xf32>
    %32 = vector.broadcast %19 : vector<1x128xf32> to vector<3x128xf32>
    %33 = arith.mulf %31, %32 : vector<3x128xf32>
    %34 = vector.extract_strided_slice %17 {offsets = [0, 32], sizes = [3, 128], strides = [1, 1]} : vector<3x162xf32> to vector<3x128xf32>
    %35 = vector.broadcast %18 : vector<1x128xf32> to vector<3x128xf32>
    %36 = arith.mulf %34, %35 : vector<3x128xf32>
    %37 = vector.extract_strided_slice %17 {offsets = [0, 33], sizes = [3, 128], strides = [1, 1]} : vector<3x162xf32> to vector<3x128xf32>
    %38 = vector.extract_strided_slice %17 {offsets = [0, 34], sizes = [3, 128], strides = [1, 1]} : vector<3x162xf32> to vector<3x128xf32>
    %39 = vector.broadcast %19 : vector<1x128xf32> to vector<3x128xf32>
    %40 = arith.mulf %38, %39 : vector<3x128xf32>
    %41 = tpu.concatenate %22, %23, %26, %29, %30, %33, %36, %37, %40 in 0 : vector<3x128xf32>, vector<3x128xf32>, vector<3x128xf32>, vector<3x128xf32>, vector<3x128xf32>, vector<3x128xf32>, vector<3x128xf32>, vector<3x128xf32>, vector<3x128xf32> -> vector<27x128xf32>
    %c0_15 = arith.constant 0 : index
    %c0_16 = arith.constant 0 : index
    %42 = vector.load %arg5[%c0_15, %c0_16] : memref<48x27xf32, #tpu.memory_space<vmem>>, vector<48x27xf32>
    %cst_17 = arith.constant dense<0.000000e+00> : vector<48x128xf32>
    %43 = tpu.matmul %42, %41, %cst_17 {dimension_numbers = #tpu.dot_dimension_numbers<[1], [0], [0], [1], [0, 0, 1, 1], [], []>} : vector<48x27xf32>, vector<27x128xf32>, vector<48x128xf32> -> vector<48x128xf32>
    %c0_18 = arith.constant 0 : index
    %c0_19 = arith.constant 0 : index
    %c0_20 = arith.constant 0 : index
    %44 = vector.load %arg7[%c0_18, %c0_19, %c0_20] : memref<1x48x128xf32, #tpu.memory_space<vmem>>, vector<1x48x128xf32>
    %45 = vector.shape_cast %44 : vector<1x48x128xf32> to vector<48x128xf32>
    %46 = vector.shape_cast %43 : vector<48x128xf32> to vector<1x48x128xf32>
    tpu.vector_store %arg7[%c0_18, %c0_19, %c0_20], %46 {strides = array<i32>} : memref<1x48x128xf32, #tpu.memory_space<vmem>>, vector<1x48x128xf32>,
    return
  }
  func.func @transform_0(%arg0: i32, %arg1: i32) -> (i32, i32, i32) {
    %c1_i32 = arith.constant 1 : i32
    %0 = arith.subi %arg1, %c1_i32 : i32
    %c0_i32 = arith.constant 0 : i32
    %1 = arith.maxsi %0, %c0_i32 : i32
    %c0_i32_0 = arith.constant 0 : i32
    %c0_i32_1 = arith.constant 0 : i32
    return %arg0, %c0_i32_0, %1 : i32, i32, i32
  }
  func.func @transform_1(%arg0: i32, %arg1: i32) -> (i32, i32, i32) {
    %c0_i32 = arith.constant 0 : i32
    %c0_i32_0 = arith.constant 0 : i32
    return %arg0, %c0_i32, %arg1 : i32, i32, i32
  }
  func.func @transform_2(%arg0: i32, %arg1: i32) -> (i32, i32, i32) {
    %c1_i32 = arith.constant 1 : i32
    %0 = arith.addi %arg1, %c1_i32 : i32
    %c1_i32_0 = arith.constant 1 : i32
    %1 = arith.minsi %0, %c1_i32_0 : i32
    %c0_i32 = arith.constant 0 : i32
    %c0_i32_1 = arith.constant 0 : i32
    return %arg0, %c0_i32, %1 : i32, i32, i32
  }
  func.func @transform_3(%arg0: i32, %arg1: i32) -> (i32, i32) {
    %c0_i32 = arith.constant 0 : i32
    %c0_i32_0 = arith.constant 0 : i32
    %c0_i32_1 = arith.constant 0 : i32
    return %c0_i32, %c0_i32_0 : i32, i32
  }
  func.func @transform_4(%arg0: i32, %arg1: i32) -> (i32, i32) {
    %c0_i32 = arith.constant 0 : i32
    %c0_i32_0 = arith.constant 0 : i32
    %c0_i32_1 = arith.constant 0 : i32
    return %c0_i32, %c0_i32_0 : i32, i32
  }
  func.func @transform_5(%arg0: i32, %arg1: i32) -> (i32, i32, i32) {
    %c0_i32 = arith.constant 0 : i32
    %c0_i32_0 = arith.constant 0 : i32
    return %arg0, %c0_i32, %arg1 : i32, i32, i32
  }
}

</mosaic_0001>

<llo_original>
// kernel: tpu_custom_call.1
$region0: #{tpu_custom_call.1}
  #allocation0 [shape = 'u32[]', space=smem, size = 0x4, offset = 0x4, fixed_abs, tag = 'smem constant byte address 0x4 - core index']
  #allocation1 [shape = 'u32[144,128]{1,0:T(1,128)}', space=vmem, size = 0x12000, scoped, tag = 'internal scratch']
  %s0 = inlined_call_operand.vmem [shape: f32[2,3,256], index: 0, kind: input, shape index: {}]
  %s1 = inlined_call_operand.vmem [shape: f32[2,3,256], index: 1, kind: input, shape index: {}]
  %s2 = inlined_call_operand.vmem [shape: f32[2,3,256], index: 2, kind: input, shape index: {}]
  %s3 = inlined_call_operand.vmem [shape: f32[48,27], index: 3, kind: input, shape index: {}]
  %s4 = inlined_call_operand.vmem [shape: f32[2,128], index: 4, kind: input, shape index: {}]
  %s5 = inlined_call_operand.hbm [shape: f32[2,48,256], index: 5, kind: output, shape index: {}]
  %s6 = sld [smem:[#allocation0]]
  $region53: #{tpu_custom_call.1} parent=0
    _
  %s8 = ssub.s32 1, %s6
  %s9 = scalar_select 0, %s8, %s6
  $region1: #{tpu_custom_call.1} parent=0
    #allocation2 [shape = 'u8[49152]{0}', space=vmem, size = 0xc000, scoped, tag = 'output window, operand 0']
    #allocation3 [shape = 's32[2]{0}', space=sflag, size = 0x8, scoped, tag = 'scoped memory for tpu_custom_call.1']
    %10 = vsyncpa [#allocation3], 0
    %s11 = scalar_lea.sflag [#allocation3], 1
    %12 = vsyncpa %s11, 0
    loop: start=0, step=1, limit=6
    $region2: #{tpu_custom_call.1} parent=1 // loop_pre_header
      _
    $region3: #{tpu_custom_call.1} parent=1 // loop_header
      %s14 = sphi 0, %s18
      %p15 = scmp.ge.s32.totalorder %s14, 6
      %s21 = sphi 0, %s33
      %s22 = sphi 0, %s29
      %s23 = sphi 0, %s21
      %s24 = sphi 0, %s22
      %s25 = sphi 0, %s23
      %s26 = sphi 0, %s24
      %s44 = sphi 0, %s46
      %s47 = sphi 0, %s44
      %s48 = sphi 0, %s47
      %s64 = sphi 0, %s48
      %s72 = sphi 0, %s74
      %s75 = sphi 0, %s72
      %s76 = sphi 0, %s75
      %s92 = sphi 0, %s76
      %s106 = sphi 0, %s108
      %s109 = sphi 0, %s106
      %s110 = sphi 0, %s109
      %s126 = sphi 0, %s110
      %s130 = sphi 0, %s130
      %s132 = sphi 0, %s130
      %s133 = sphi 0, %s132
      %s147 = sphi 0, %s133
      %s151 = sphi 0, %s151
      %s153 = sphi 0, %s151
      %s154 = sphi 0, %s153
      %s168 = sphi 0, %s154
      %s176 = sphi 0, %s178
      %s179 = sphi 0, %s176
      %s180 = sphi 0, %s179
      %s196 = sphi 0, %s180
    $region4: #{tpu_custom_call.1} parent=1 // loop_header_branch
      %17 = sbr.rel (%p15) target = $region8
    $region5: #{tpu_custom_call.1} parent=1 // loop_body
      %s19 = ssub.s32 %s14, 1
      %s20 = ssub.s32 %s14, 2
      %s27 = sadd.s32 1, %s22
      %p28 = scmp.ge.s32.totalorder %s27, 2
      %s29 = scalar_select %p28, 0, %s27
      %s30 = sadd.s32 1, %s21
      %s31 = scalar_select %p28, %s30, %s21
      %p32 = scmp.ge.s32.totalorder %s31, 2
      %s33 = scalar_select %p32, 0, %s31
      %s34 = ssub.s32 %s22, 1
      %p35 = scmp.gt.s32.totalorder %s34, 0
      %s36 = scalar_select %p35, %s34, 0
      %s37 = ssub.s32 %s29, 1
      %p38 = scmp.gt.s32.totalorder %s37, 0
      %s39 = scalar_select %p38, %s37, 0
      %s40 = ssub.s32 %s21, %s33
      %s41 = ssub.s32 %s36, %s39
      %s42 = sor.u32 %s40, %s41
      %p43 = scmp.eq.s32.totalorder %s42, 0
      %s45 = sadd.s32 %s44, 1
      %s46 = scalar_select %p43, %s44, %s45
      %p49 = pneg %p43
      %p50 = scmp.eq.s32.totalorder %s14, 3
      %p51 = por %p49, %p50
      %p52 = scmp.ne.s32.totalorder %s44, %s47
      %p53 = scmp.eq.s32.totalorder %s14, 0
      %p54 = por %p52, %p53
      %p55 = scmp.ne.s32.totalorder %s44, %s47
      %p56 = scmp.eq.s32.totalorder %s19, 3
      %p57 = por %p55, %p56
      %p58 = scmp.ne.s32.totalorder %s47, %s48
      %p59 = scmp.eq.s32.totalorder %s19, 0
      %p60 = por %p58, %p59
      %p61 = scmp.ne.s32.totalorder %s47, %s48
      %p62 = scmp.eq.s32.totalorder %s20, 3
      %p63 = por %p61, %p62
      %p65 = scmp.ne.s32.totalorder %s48, %s64
      %p66 = scmp.eq.s32.totalorder %s20, 0
      %p67 = por %p65, %p66
      %s68 = ssub.s32 %s21, %s33
      %s69 = ssub.s32 %s22, %s29
      %s70 = sor.u32 %s68, %s69
      %p71 = scmp.eq.s32.totalorder %s70, 0
      %s73 = sadd.s32 %s72, 1
      %s74 = scalar_select %p71, %s72, %s73
      %p77 = pneg %p71
      %p78 = scmp.eq.s32.totalorder %s14, 3
      %p79 = por %p77, %p78
      %p80 = scmp.ne.s32.totalorder %s72, %s75
      %p81 = scmp.eq.s32.totalorder %s14, 0
      %p82 = por %p80, %p81
      %p83 = scmp.ne.s32.totalorder %s72, %s75
      %p84 = scmp.eq.s32.totalorder %s19, 3
      %p85 = por %p83, %p84
      %p86 = scmp.ne.s32.totalorder %s75, %s76
      %p87 = scmp.eq.s32.totalorder %s19, 0
      %p88 = por %p86, %p87
      %p89 = scmp.ne.s32.totalorder %s75, %s76
      %p90 = scmp.eq.s32.totalorder %s20, 3
      %p91 = por %p89, %p90
      %p93 = scmp.ne.s32.totalorder %s76, %s92
      %p94 = scmp.eq.s32.totalorder %s20, 0
      %p95 = por %p93, %p94
      %s96 = sadd.s32 %s22, 1
      %p97 = scmp.lt.s32.totalorder %s96, 1
      %s98 = scalar_select %p97, %s96, 1
      %s99 = sadd.s32 %s29, 1
      %p100 = scmp.lt.s32.totalorder %s99, 1
      %s101 = scalar_select %p100, %s99, 1
      %s102 = ssub.s32 %s21, %s33
      %s103 = ssub.s32 %s98, %s101
      %s104 = sor.u32 %s102, %s103
      %p105 = scmp.eq.s32.totalorder %s104, 0
      %s107 = sadd.s32 %s106, 1
      %s108 = scalar_select %p105, %s106, %s107
      %p111 = pneg %p105
      %p112 = scmp.eq.s32.totalorder %s14, 3
      %p113 = por %p111, %p112
      %p114 = scmp.ne.s32.totalorder %s106, %s109
      %p115 = scmp.eq.s32.totalorder %s14, 0
      %p116 = por %p114, %p115
      %p117 = scmp.ne.s32.totalorder %s106, %s109
      %p118 = scmp.eq.s32.totalorder %s19, 3
      %p119 = por %p117, %p118
      %p120 = scmp.ne.s32.totalorder %s109, %s110
      %p121 = scmp.eq.s32.totalorder %s19, 0
      %p122 = por %p120, %p121
      %p123 = scmp.ne.s32.totalorder %s109, %s110
      %p124 = scmp.eq.s32.totalorder %s20, 3
      %p125 = por %p123, %p124
      %p127 = scmp.ne.s32.totalorder %s110, %s126
      %p128 = scmp.eq.s32.totalorder %s20, 0
      %p129 = por %p127, %p128
      %s131 = sadd.s32 %s130, 1
      %p134 = scmp.eq.s32.totalorder %s14, 3
      %p135 = scmp.ne.s32.totalorder %s130, %s132
      %p136 = scmp.eq.s32.totalorder %s14, 0
      %p137 = por %p135, %p136
      %p138 = scmp.ne.s32.totalorder %s130, %s132
      %p139 = scmp.eq.s32.totalorder %s19, 3
      %p140 = por %p138, %p139
      %p141 = scmp.ne.s32.totalorder %s132, %s133
      %p142 = scmp.eq.s32.totalorder %s19, 0
      %p143 = por %p141, %p142
      %p144 = scmp.ne.s32.totalorder %s132, %s133
      %p145 = scmp.eq.s32.totalorder %s20, 3
      %p146 = por %p144, %p145
      %p148 = scmp.ne.s32.totalorder %s133, %s147
      %p149 = scmp.eq.s32.totalorder %s20, 0
      %p150 = por %p148, %p149
      %s152 = sadd.s32 %s151, 1
      %p155 = scmp.eq.s32.totalorder %s14, 3
      %p156 = scmp.ne.s32.totalorder %s151, %s153
      %p157 = scmp.eq.s32.totalorder %s14, 0
      %p158 = por %p156, %p157
      %p159 = scmp.ne.s32.totalorder %s151, %s153
      %p160 = scmp.eq.s32.totalorder %s19, 3
      %p161 = por %p159, %p160
      %p162 = scmp.ne.s32.totalorder %s153, %s154
      %p163 = scmp.eq.s32.totalorder %s19, 0
      %p164 = por %p162, %p163
      %p165 = scmp.ne.s32.totalorder %s153, %s154
      %p166 = scmp.eq.s32.totalorder %s20, 3
      %p167 = por %p165, %p166
      %p169 = scmp.ne.s32.totalorder %s154, %s168
      %p170 = scmp.eq.s32.totalorder %s20, 0
      %p171 = por %p169, %p170
      %s172 = ssub.s32 %s21, %s33
      %s173 = ssub.s32 %s22, %s29
      %s174 = sor.u32 %s172, %s173
      %p175 = scmp.eq.s32.totalorder %s174, 0
      %s177 = sadd.s32 %s176, 1
      %s178 = scalar_select %p175, %s176, %s177
      %p181 = pneg %p175
      %p182 = scmp.eq.s32.totalorder %s14, 3
      %p183 = por %p181, %p182
      %p184 = scmp.ne.s32.totalorder %s176, %s179
      %p185 = scmp.eq.s32.totalorder %s14, 0
      %p186 = por %p184, %p185
      %p187 = scmp.ne.s32.totalorder %s176, %s179
      %p188 = scmp.eq.s32.totalorder %s19, 3
      %p189 = por %p187, %p188
      %p190 = scmp.ne.s32.totalorder %s179, %s180
      %p191 = scmp.eq.s32.totalorder %s19, 0
      %p192 = por %p190, %p191
      %p193 = scmp.ne.s32.totalorder %s179, %s180
      %p194 = scmp.eq.s32.totalorder %s20, 3
      %p195 = por %p193, %p194
      %p197 = scmp.ne.s32.totalorder %s180, %s196
      %p198 = scmp.eq.s32.totalorder %s20, 0
      %p199 = por %p197, %p198
      %p200 = scmp.le.s32.totalorder 1, %s14
      %p201 = scmp.lt.s32.totalorder %s14, 5
      %p202 = pnand %p200, %p201
      %p203 = pneg %p202
      // Predicated region
      $region9: #{tpu_custom_call.1} parent=5 // pred_check
        _
      $region10: #{tpu_custom_call.1} parent=5 // pred_check_branch
        %205 = sbr.rel (%p202) target = $region12
      $region11: #{tpu_custom_call.1} parent=5 // pred_region
        %s206 = ssub.s32 %s14, 1
        // Predicated region
        $region13: #{tpu_custom_call.1} parent=11 // pred_check
          %p207 = pneg %p143
        $region14: #{tpu_custom_call.1} parent=11 // pred_check_branch
          %209 = sbr.rel (%p207) target = $region16
        $region15: #{tpu_custom_call.1} parent=11 // pred_region
          _
        $region16: #{tpu_custom_call.1} parent=11 // pred_fallthru
          _
        // Predicated region
        $region17: #{tpu_custom_call.1} parent=11 // pred_check
          %p210 = pneg %p164
        $region18: #{tpu_custom_call.1} parent=11 // pred_check_branch
          %212 = sbr.rel (%p210) target = $region20
        $region19: #{tpu_custom_call.1} parent=11 // pred_region
          _
        $region20: #{tpu_custom_call.1} parent=11 // pred_fallthru
          _
      $region12: #{tpu_custom_call.1} parent=5 // pred_fallthru
        _
      %p213 = scmp.lt.s32.totalorder %s14, 4
      // Predicated region
      $region21: #{tpu_custom_call.1} parent=5 // pred_check
        %p214 = pneg %p213
      $region22: #{tpu_custom_call.1} parent=5 // pred_check_branch
        %216 = sbr.rel (%p214) target = $region24
      $region23: #{tpu_custom_call.1} parent=5 // pred_region
        // Predicated region
        $region25: #{tpu_custom_call.1} parent=23 // pred_check
          %p217 = pneg %p54
        $region26: #{tpu_custom_call.1} parent=23 // pred_check_branch
          %219 = sbr.rel (%p217) target = $region28
        $region27: #{tpu_custom_call.1} parent=23 // pred_region
          %s220 = ssub.s32 %s22, 1
          %p221 = scmp.gt.s32.totalorder %s220, 0
          %s222 = scalar_select %p221, %s220, 0
          %p223 = scmp.lt.s32.totalorder %s21, 1
          %s224 = scalar_select %p223, %s21, 1
          %p225 = scmp.lt.s32.totalorder %s222, 1
          %s226 = scalar_select %p225, %s222, 1
          %s227 = smul.addr %s224, 2
          %s228 = sadd.s32 %s226, %s227
          %s229 = smul.addr %s228, 4
          %s230 = scalar_lea.vmem %s0, %s229
          %s231 = ssub.s32 %s22, 1
          %p232 = scmp.gt.s32.totalorder %s231, 0
          %s233 = scalar_select %p232, %s231, 0
        $region28: #{tpu_custom_call.1} parent=23 // pred_fallthru
          _
        // Predicated region
        $region29: #{tpu_custom_call.1} parent=23 // pred_check
          %p234 = pneg %p82
        $region30: #{tpu_custom_call.1} parent=23 // pred_check_branch
          %236 = sbr.rel (%p234) target = $region32
        $region31: #{tpu_custom_call.1} parent=23 // pred_region
          %p237 = scmp.lt.s32.totalorder %s21, 1
          %s238 = scalar_select %p237, %s21, 1
          %p239 = scmp.lt.s32.totalorder %s22, 1
          %s240 = scalar_select %p239, %s22, 1
          %s241 = smul.addr %s238, 2
          %s242 = sadd.s32 %s240, %s241
          %s243 = smul.addr %s242, 4
          %s244 = scalar_lea.vmem %s1, %s243
        $region32: #{tpu_custom_call.1} parent=23 // pred_fallthru
          _
        // Predicated region
        $region33: #{tpu_custom_call.1} parent=23 // pred_check
          %p245 = pneg %p116
        $region34: #{tpu_custom_call.1} parent=23 // pred_check_branch
          %247 = sbr.rel (%p245) target = $region36
        $region35: #{tpu_custom_call.1} parent=23 // pred_region
          %s248 = sadd.s32 %s22, 1
          %p249 = scmp.lt.s32.totalorder %s248, 1
          %s250 = scalar_select %p249, %s248, 1
          %p251 = scmp.lt.s32.totalorder %s21, 1
          %s252 = scalar_select %p251, %s21, 1
          %p253 = scmp.lt.s32.totalorder %s250, 1
          %s254 = scalar_select %p253, %s250, 1
          %s255 = smul.addr %s252, 2
          %s256 = sadd.s32 %s254, %s255
          %s257 = smul.addr %s256, 4
          %s258 = scalar_lea.vmem %s2, %s257
          %s259 = sadd.s32 %s22, 1
          %p260 = scmp.lt.s32.totalorder %s259, 1
          %s261 = scalar_select %p260, %s259, 1
        $region36: #{tpu_custom_call.1} parent=23 // pred_fallthru
          _
      $region24: #{tpu_custom_call.1} parent=5 // pred_fallthru
        _
      %p262 = scmp.le.s32.totalorder 1, %s14
      %p263 = scmp.lt.s32.totalorder %s14, 5
      %p264 = pnand %p262, %p263
      %p265 = pneg %p264
      // Predicated region
      $region37: #{tpu_custom_call.1} parent=5 // pred_check
        _
      $region38: #{tpu_custom_call.1} parent=5 // pred_check_branch
        %267 = sbr.rel (%p264) target = $region40
      $region39: #{tpu_custom_call.1} parent=5 // pred_region
        %s268 = ssub.s32 %s14, 1
        %s269 = ssub.s32 %s24, 1
        %p270 = scmp.gt.s32.totalorder %s269, 0
        %s271 = scalar_select %p270, %s269, 0
        %p272 = scmp.lt.s32.totalorder %s23, 1
        %s273 = scalar_select %p272, %s23, 1
        %p274 = scmp.lt.s32.totalorder %s271, 1
        %s275 = scalar_select %p274, %s271, 1
        %s276 = smul.addr %s273, 2
        %s277 = sadd.s32 %s275, %s276
        %s278 = smul.addr %s277, 4
        %s279 = scalar_lea.vmem %s0, %s278
        %p280 = pneg %p60
        %p281 = pneg %p57
        %p282 = scmp.lt.s32.totalorder %s23, 1
        %s283 = scalar_select %p282, %s23, 1
        %p284 = scmp.lt.s32.totalorder %s24, 1
        %s285 = scalar_select %p284, %s24, 1
        %s286 = smul.addr %s283, 2
        %s287 = sadd.s32 %s285, %s286
        %s288 = smul.addr %s287, 4
        %s289 = scalar_lea.vmem %s1, %s288
        %p290 = pneg %p88
        %p291 = pneg %p85
        %s292 = sadd.s32 %s24, 1
        %p293 = scmp.lt.s32.totalorder %s292, 1
        %s294 = scalar_select %p293, %s292, 1
        %p295 = scmp.lt.s32.totalorder %s23, 1
        %s296 = scalar_select %p295, %s23, 1
        %p297 = scmp.lt.s32.totalorder %s294, 1
        %s298 = scalar_select %p297, %s294, 1
        %s299 = smul.addr %s296, 2
        %s300 = sadd.s32 %s298, %s299
        %s301 = smul.addr %s300, 4
        %s302 = scalar_lea.vmem %s2, %s301
        %p303 = pneg %p122
        %p304 = pneg %p119
        %p305 = pneg %p143
        %p306 = pneg %p140
        %p307 = pneg %p164
        %p308 = pneg %p161
        %p309 = pneg %p192
        %p310 = pneg %p189
        %s311 = sand.u32 %s179, 1
        %s312 = scalar_lea.sflag [#allocation3], %s311
        %s313 = sand.u32 %s179, 1
        %s314 = smul.addr %s313, 48
        %s315 = scalar_lea.vmem [#allocation2], %s314
        %s316 = ssub.s32 %s24, 1
        %p317 = scmp.gt.s32.totalorder %s316, 0
        %s318 = scalar_select %p317, %s316, 0
        %p319 = scmp.lt.s32.totalorder %s23, 1
        %s320 = scalar_select %p319, %s23, 1
        %p321 = scmp.lt.s32.totalorder %s318, 1
        %s322 = scalar_select %p321, %s318, 1
        %s323 = smul.addr %s320, 2
        %s324 = sadd.s32 %s322, %s323
        %s325 = smul.addr %s324, 4
        %s326 = scalar_lea.vmem %s0, %s325
        %s327 = ssub.s32 %s24, 1
        %p328 = scmp.gt.s32.totalorder %s327, 0
        %s329 = scalar_select %p328, %s327, 0
        %p330 = scmp.lt.s32.totalorder %s23, 1
        %s331 = scalar_select %p330, %s23, 1
        %p332 = scmp.lt.s32.totalorder %s24, 1
        %s333 = scalar_select %p332, %s24, 1
        %s334 = smul.addr %s331, 2
        %s335 = sadd.s32 %s333, %s334
        %s336 = smul.addr %s335, 4
        %s337 = scalar_lea.vmem %s1, %s336
        %s338 = sadd.s32 %s24, 1
        %p339 = scmp.lt.s32.totalorder %s338, 1
        %s340 = scalar_select %p339, %s338, 1
        %p341 = scmp.lt.s32.totalorder %s23, 1
        %s342 = scalar_select %p341, %s23, 1
        %p343 = scmp.lt.s32.totalorder %s340, 1
        %s344 = scalar_select %p343, %s340, 1
        %s345 = smul.addr %s342, 2
        %s346 = sadd.s32 %s344, %s345
        %s347 = smul.addr %s346, 4
        %s348 = scalar_lea.vmem %s2, %s347
        %s349 = sadd.s32 %s24, 1
        %p350 = scmp.lt.s32.totalorder %s349, 1
        %s351 = scalar_select %p350, %s349, 1
        %v352 = vld [vmem:[%s337] sm:$0x7]
        %v353 = vld [vmem:[%s326] sm:$0x7]
        %v354 = vld [vmem:[%s348] sm:$0x7]
        %p355 = scmp.eq.s32.totalorder %s24, 0
        %s356 = scalar_select %p355, 0.0, 1.0
        %v357 = vstv %s356
        %v358 = vmul.f32 %v353, %v357
        %p359 = scmp.eq.s32.totalorder %s24, 1
        %s360 = scalar_select %p359, 0.0, 1.0
        %v361 = vstv %s360
        %v362 = vmul.f32 %v354, %v361
        %364 = vrot.lane.b32.xlu0 %v358, 17
        %v365 = vpop.permute.xlu0 %364
        %368 = vrot.lane.b32.xlu0 %v352, 17
        %v369 = vpop.permute.xlu0 %368
        %372 = vrot.lane.b32.xlu0 %v362, 17
        %v373 = vpop.permute.xlu0 %372
        %vm375 = vcmask 7168
        %v376 = vsel %vm375, 0.0, %v365
        %vm377 = vcmask 138240
        %v378 = vsel %vm377, %v376, %v369
        %v379 = vsel %vm377, %v369, %v373
        %vm380 = vcmask 269312
        %v381 = vsel %vm380, %v379, 0.0
        %v382 = vld [vmem:[%s4] sm:$0x1]
        %v383 = vld [vmem:[%s4 + $0x1] sm:$0x1]
        %v384 = vlaneseq
        %v385 = vshrl.u32 %v384, 7
        %v386 = vsub.s32 0, %v385
        %v387 = vrot.slane %v382, %v386
        %v388 = vmul.f32 %v378, %v387
        %v389 = vlaneseq
        %v390 = vshrl.u32 %v389, 7
        %v391 = vsub.s32 0, %v390
        %v392 = vrot.slane %v383, %v391
        %394 = vrot.lane.b32.xlu0 %v392, 2
        %v395 = vpop.permute.xlu0 %394
        %v397 = vmul.f32 %v378, %v395
        %v398 = vmul.f32 %v381, %v395
        %400 = vrot.lane.b32.xlu0 %v387, 16
        %v401 = vpop.permute.xlu0 %400
        %v403 = vmul.f32 %v378, %v401
        %v404 = vmul.f32 %v381, %v401
        %405 = vrot.lane.b32.xlu0 %v392, 18
        %v406 = vpop.permute.xlu0 %405
        %v408 = vmul.f32 %v378, %v406
        %v409 = vmul.f32 %v381, %v406
        %410 = vrot.lane.b32.xlu0 %v387, 32
        %v411 = vpop.permute.xlu0 %410
        %v413 = vmul.f32 %v378, %v411
        %v414 = vmul.f32 %v381, %v411
        %415 = vrot.lane.b32.xlu0 %v392, 34
        %v416 = vpop.permute.xlu0 %415
        %v418 = vmul.f32 %v378, %v416
        %v419 = vmul.f32 %v381, %v416
        %v422 = vrot.slane %v378, 5
        %v423 = vrot.slane %v381, 5
        %424 = vrot.lane.b32.xlu0 %v422, 127
        %v425 = vpop.permute.xlu0 %424
        %426 = vrot.lane.b32.xlu0 %v423, 127
        %v427 = vpop.permute.xlu0 %426
        %vm428 = vcmask 1039360
        %v429 = vsel %vm428, %v425, %v427
        %v433 = vrot.slane %v397, 2
        %v434 = vrot.slane %v398, 2
        %435 = vrot.lane.b32.xlu0 %v433, 126
        %v436 = vpop.permute.xlu0 %435
        %437 = vrot.lane.b32.xlu0 %v434, 126
        %v438 = vpop.permute.xlu0 %437
        %vm439 = vcmask 1031168
        %v440 = vsel %vm439, %v436, %v438
        %v444 = vrot.slane %v403, 7
        %v445 = vrot.slane %v404, 7
        %446 = vrot.lane.b32.xlu0 %v444, 112
        %v447 = vpop.permute.xlu0 %446
        %448 = vrot.lane.b32.xlu0 %v445, 112
        %v449 = vpop.permute.xlu0 %448
        %vm450 = vcmask 916480
        %v451 = vsel %vm450, %v447, %v449
        %v453 = vrot.slane %v378, 4
        %v454 = vrot.slane %v381, 4
        %455 = vrot.lane.b32.xlu0 %v453, 111
        %v456 = vpop.permute.xlu0 %455
        %457 = vrot.lane.b32.xlu0 %v454, 111
        %v458 = vpop.permute.xlu0 %457
        %vm459 = vcmask 908288
        %v460 = vsel %vm459, %v456, %v458
        %v464 = vrot.slane %v408, 1
        %v465 = vrot.slane %v409, 1
        %466 = vrot.lane.b32.xlu0 %v464, 110
        %v467 = vpop.permute.xlu0 %466
        %468 = vrot.lane.b32.xlu0 %v465, 110
        %v469 = vpop.permute.xlu0 %468
        %vm470 = vcmask 900096
        %v471 = vsel %vm470, %v467, %v469
        %v475 = vrot.slane %v413, 6
        %v476 = vrot.slane %v414, 6
        %477 = vrot.lane.b32.xlu0 %v475, 96
        %v478 = vpop.permute.xlu0 %477
        %479 = vrot.lane.b32.xlu0 %v476, 96
        %v480 = vpop.permute.xlu0 %479
        %vm481 = vcmask 785408
        %v482 = vsel %vm481, %v478, %v480
        %v484 = vrot.slane %v378, 3
        %v485 = vrot.slane %v381, 3
        %486 = vrot.lane.b32.xlu0 %v484, 95
        %v487 = vpop.permute.xlu0 %486
        %488 = vrot.lane.b32.xlu0 %v485, 95
        %v489 = vpop.permute.xlu0 %488
        %vm490 = vcmask 777216
        %v491 = vsel %vm490, %v487, %v489
        %495 = vrot.lane.b32.xlu0 %v418, 94
        %v496 = vpop.permute.xlu0 %495
        %497 = vrot.lane.b32.xlu0 %v419, 94
        %v498 = vpop.permute.xlu0 %497
        %vm499 = vcmask 769024
        %v500 = vsel %vm499, %v496, %v498
        %vm501 = vcmask 1042432
        %v502 = vsel %vm501, %v388, %v429
        %vm503 = vcmask 1045504
        %v504 = vsel %vm503, %v502, %v440
        %vm505 = vcmask 1040384
        %v506 = vsel %vm505, %v440, %v451
        %vm507 = vcmask 1043456
        %v508 = vsel %vm507, %v506, %v460
        %vm509 = vcmask 1046528
        %v510 = vsel %vm509, %v508, %v471
        %vm511 = vcmask 1041408
        %v512 = vsel %vm511, %v471, %v482
        %vm513 = vcmask 1044480
        %v514 = vsel %vm513, %v512, %v491
        %v515 = vld [vmem:[%s3] sm:$0xff]
        %v516 = vld [vmem:[%s3 + $0x8] sm:$0xff]
        %v517 = vld [vmem:[%s3 + $0x10] sm:$0xff]
        %v518 = vld [vmem:[%s3 + $0x18] sm:$0xff]
        %v519 = vld [vmem:[%s3 + $0x20] sm:$0xff]
        %v520 = vld [vmem:[%s3 + $0x28] sm:$0xff]
        %vm521 = vcmask 220160
        %v523 = vsel %vm521, %v515, 0
        %v526 = vsel %vm521, %v516, 0
        %v529 = vsel %vm521, %v517, 0
        %v532 = vsel %vm521, %v518, 0
        %v535 = vsel %vm521, %v519, 0
        %v538 = vsel %vm521, %v520, 0
        %v540 = vsel %vm501, %v500, 0
        %542 = vmatprep.subr.mxu0 0.0
        %543 = vmatpush1.msra.mxu0 0.0
        %544 = vmatprep.subr.mxu0 0.0
        %545 = vmatpush1.msra.mxu0 0.0
        %546 = vmatprep.subr.mxu0 0.0
        %547 = vmatpush1.msra.mxu0 0.0
        %548 = vmatprep.subr.mxu0 0.0
        %549 = vmatpush1.msra.mxu0 0.0
        %550 = vmatprep.subr.mxu0 0.0
        %551 = vmatpush1.msra.mxu0 0.0
        %552 = vmatprep.subr.mxu0 0.0
        %553 = vmatpush1.msra.mxu0 0.0
        %554 = vmatprep.subr.mxu0 0.0
        %555 = vmatpush1.msra.mxu0 0.0
        %556 = vmatprep.subr.mxu0 0.0
        %557 = vmatpush1.msra.mxu0 0.0
        %558 = vmatprep.subr.mxu0 0.0
        %559 = vmatpush1.msra.mxu0 0.0
        %560 = vmatprep.subr.mxu0 0.0
        %561 = vmatpush1.msra.mxu0 0.0
        %562 = vmatprep.subr.mxu0 0.0
        %563 = vmatpush1.msra.mxu0 0.0
        %564 = vmatprep.subr.mxu0 0.0
        %565 = vmatpush1.msra.mxu0 0.0
        %566 = vmatprep.subr.mxu0 0.0
        %567 = vmatpush1.msra.mxu0 %v540
        %568 = vmatprep.subr.mxu0 0.0
        %569 = vmatpush1.msra.mxu0 %v514
        %570 = vmatprep.subr.mxu0 0.0
        %571 = vmatpush1.msra.mxu0 %v510
        %572 = vmatprep.subr.mxu0 0.0
        %573 = vmatpush1.msra.mxu0 %v504
        %574 = vmatprep.subr.mxu0 0.0
        %575 = vmatpush2.msra.mxu0 0.0
        %576 = vmatprep.subr.mxu0 0.0
        %577 = vmatpush2.msra.mxu0 0.0
        %578 = vmatprep.subr.mxu0 0.0
        %579 = vmatpush2.msra.mxu0 0.0
        %580 = vmatprep.subr.mxu0 0.0
        %581 = vmatpush2.msra.mxu0 0.0
        %582 = vmatprep.subr.mxu0 0.0
        %583 = vmatpush2.msra.mxu0 0.0
        %584 = vmatprep.subr.mxu0 0.0
        %585 = vmatpush2.msra.mxu0 0.0
        %586 = vmatprep.subr.mxu0 0.0
        %587 = vmatpush2.msra.mxu0 0.0
        %588 = vmatprep.subr.mxu0 0.0
        %589 = vmatpush2.msra.mxu0 0.0
        %590 = vmatprep.subr.mxu0 0.0
        %591 = vmatpush2.msra.mxu0 0.0
        %592 = vmatprep.subr.mxu0 0.0
        %593 = vmatpush2.msra.mxu0 0.0
        %594 = vmatprep.subr.mxu0 0.0
        %595 = vmatpush2.msra.mxu0 0.0
        %596 = vmatprep.subr.mxu0 0.0
        %597 = vmatpush2.msra.mxu0 0.0
        %598 = vmatprep.subr.mxu0 0.0
        %599 = vmatpush2.msra.mxu0 0.0
        %600 = vmatprep.subr.mxu0 0.0
        %601 = vmatpush2.msra.mxu0 0.0
        %602 = vmatprep.subr.mxu0 0.0
        %603 = vmatpush2.msra.mxu0 0.0
        %604 = vmatprep.subr.mxu0 0.0
        %605 = vmatpush2.msra.mxu0 0.0
        %606 = vmatprep.mubr.f32.mxu0 0.0
        %607 = vmatmul.mubr.f32.gmra.mxu0 %v523
        %v608 = vpop.f32.mrf.mxu0
        %v609 = vadd.f32 0.0, %v608
        %v610 = vpop.f32.mrf.mxu0
        %611 = vmatprep.mubr.f32.mxu0 0.0
        %612 = vmatmul.mubr.f32.gmra.mxu0 %v526
        %v613 = vpop.f32.mrf.mxu0
        %v614 = vadd.f32 0.0, %v613
        %v615 = vpop.f32.mrf.mxu0
        %616 = vmatprep.mubr.f32.mxu0 0.0
        %617 = vmatmul.mubr.f32.gmra.mxu0 %v529
        %v618 = vpop.f32.mrf.mxu0
        %v619 = vadd.f32 0.0, %v618
        %v620 = vpop.f32.mrf.mxu0
        %621 = vmatprep.mubr.f32.mxu0 0.0
        %622 = vmatmul.mubr.f32.gmra.mxu0 %v532
        %v623 = vpop.f32.mrf.mxu0
        %v624 = vadd.f32 0.0, %v623
        %v625 = vpop.f32.mrf.mxu0
        %626 = vmatprep.mubr.f32.mxu0 0.0
        %627 = vmatmul.mubr.f32.gmra.mxu0 %v535
        %v628 = vpop.f32.mrf.mxu0
        %v629 = vadd.f32 0.0, %v628
        %v630 = vpop.f32.mrf.mxu0
        %631 = vmatprep.mubr.f32.mxu0 0.0
        %632 = vmatmul.mubr.f32.gmra.mxu0 %v538
        %v633 = vpop.f32.mrf.mxu0
        %v634 = vadd.f32 0.0, %v633
        %v635 = vpop.f32.mrf.mxu0
        %636 = vdwg.mxu0
        %637 = vst [vmem:[%s315] sm:$0xff] %v609
        %638 = vst [vmem:[%s315 + $0x8] sm:$0xff] %v614
        %639 = vst [vmem:[%s315 + $0x10] sm:$0xff] %v619
        %640 = vst [vmem:[%s315 + $0x18] sm:$0xff] %v624
        %641 = vst [vmem:[%s315 + $0x20] sm:$0xff] %v629
        %642 = vst [vmem:[%s315 + $0x28] sm:$0xff] %v634
        %s643 = sand.u32 %s179, 1
        %s644 = scalar_lea.sflag [#allocation3], %s643
        %s645 = sand.u32 %s179, 1
        %s646 = smul.addr %s645, 48
        %s647 = scalar_lea.vmem [#allocation2], %s646
        // Predicated region
        $region41: #{tpu_custom_call.1} parent=39 // pred_check
          %p648 = pneg %p189
        $region42: #{tpu_custom_call.1} parent=39 // pred_check_branch
          %650 = sbr.rel (%p648) target = $region44
        $region43: #{tpu_custom_call.1} parent=39 // pred_region
          %s652 = ssub.s32 768, 768
          %653 = vsyncadd %s644, %s652
          %s654 = smul.addr %s23, 12
          %s655 = sadd.s32 %s24, %s654
          %s656 = smul.addr %s655, 128
          %s657 = scalar_lea.hbm %s5, %s656
          %s658 = sshll.u32 %s647, 4
          %s659 = int_to_ptr.vmem [resolvable:$true] %s658
          %664 = dma.vmem_to_hbm [thread:$0]  %s659, 768, %s657, %s644, 128, 256, 8
        $region44: #{tpu_custom_call.1} parent=39 // pred_fallthru
          _
      $region40: #{tpu_custom_call.1} parent=5 // pred_fallthru
        _
      %p665 = scmp.le.s32.totalorder 2, %s14
      // Predicated region
      $region45: #{tpu_custom_call.1} parent=5 // pred_check
        %p666 = pneg %p665
      $region46: #{tpu_custom_call.1} parent=5 // pred_check_branch
        %668 = sbr.rel (%p666) target = $region48
      $region47: #{tpu_custom_call.1} parent=5 // pred_region
        %s669 = ssub.s32 %s14, 2
        // Predicated region
        $region49: #{tpu_custom_call.1} parent=47 // pred_check
          %p670 = pneg %p195
        $region50: #{tpu_custom_call.1} parent=47 // pred_check_branch
          %672 = sbr.rel (%p670) target = $region52
        $region51: #{tpu_custom_call.1} parent=47 // pred_region
          %s673 = sand.u32 %s180, 1
          %s674 = scalar_lea.sflag [#allocation3], %s673
          %s675 = sand.u32 %s180, 1
          %s676 = smul.addr %s675, 48
          %s677 = scalar_lea.vmem [#allocation2], %s676
          %678 = dma.done %s674, 768
        $region52: #{tpu_custom_call.1} parent=47 // pred_fallthru
          _
      $region48: #{tpu_custom_call.1} parent=5 // pred_fallthru
        _
    $region6: #{tpu_custom_call.1} parent=1 // loop_footer
      %s18 = sadd.s32 1, %s14
    $region7: #{tpu_custom_call.1} parent=1 // loop_footer_branch
      %13 = sbr.rel target = $region3
    $region8: #{tpu_custom_call.1} parent=1 // loop_exit
      _
    %679 = vsyncpa [#allocation3], 1
    %s680 = scalar_lea.sflag [#allocation3], 1
    %681 = vsyncpa %s680, 1

</llo_original>
